<compile_context>
chip_gen: v6e
topology: v6e:2x2x1
jax: 0.10.0
libtpu: 0.0.40
codegen_flags: <defaults>
</compile_context>

<pallas_src>
import jax
import jax.numpy as jnp
from jax.experimental import pallas as pl
from jax.experimental.pallas import tpu as pltpu


def _vd_kernel(x_ref, eps_ref, alpha_ref, o_ref):
    # alpha_ref is (1, L) and broadcasts over the row (sublane/batch) axis.
    o_ref[...] = x_ref[...] * (eps_ref[...] * alpha_ref[...] + 1.0)


def variational_dropout(x, epsilon, log_alpha, *, max_alpha=1.0,
                        target_tile_bytes=2 * 1024 * 1024):
    """x: (B, D), epsilon: (B, D), log_alpha: (D,). Returns x * (eps*alpha + 1)."""
    B, D = x.shape

    # Hoisted parameter math: clamp(max=max_alpha) then exp, done once on (D,).
    alpha = jnp.exp(jnp.minimum(log_alpha, jnp.asarray(max_alpha, log_alpha.dtype)))
    alpha = alpha.astype(x.dtype)

    # --- Lane-dense repack when the feature dim is narrower than 128 lanes. ---
    if D % 128 != 0 and 128 % D == 0 and (B * D) % 128 == 0:
        reps = 128 // D
        rows, L = (B * D) // 128, 128
        x2 = x.reshape(rows, L)
        eps2 = epsilon.reshape(rows, L)
        alpha2 = jnp.tile(alpha, reps).reshape(1, L)   # alpha pattern repeats in-lane
    else:
        rows, L = B, D
        x2, eps2 = x, epsilon
        alpha2 = alpha.reshape(1, D)

    # --- Row-tile size: ~target_tile_bytes per tile, sublane(8)-aligned. ---
    bytes_per_row = L * jnp.dtype(x.dtype).itemsize
    tb = max(1, target_tile_bytes // bytes_per_row)
    tb = min(tb, rows)
    if tb < rows:
        tb = max(8, (tb // 8) * 8)   # aligned block; Pallas handles a ragged tail
    grid = (pl.cdiv(rows, tb),)

    out = pl.pallas_call(
        _vd_kernel,
        out_shape=jax.ShapeDtypeStruct((rows, L), x.dtype),
        grid=grid,
        in_specs=[
            pl.BlockSpec((tb, L), lambda i: (i, 0)),   # x tile
            pl.BlockSpec((tb, L), lambda i: (i, 0)),   # epsilon tile
            pl.BlockSpec((1, L), lambda i: (0, 0)),    # alpha row (resident)
        ],
        out_specs=pl.BlockSpec((tb, L), lambda i: (i, 0)),
        compiler_params=pltpu.CompilerParams(
            dimension_semantics=("parallel",)),        # megacore-shardable on v7x
    )(x2, eps2, alpha2)

    return out.reshape(B, D)


if __name__ == "__main__":
    # Small shapes consistent with the module: batch=8, hidden dim=32.
    B, D = 8, 32
    max_alpha = 1.0

    # Deterministic parameter init, exactly as in __init__:
    #   log_alpha = log(ones(dim) * alpha) = zeros(dim) for alpha=1.0
    log_alpha = jnp.log(jnp.ones((D,), dtype=jnp.float32) * max_alpha)

    key = jax.random.PRNGKey(0)
    kx, keps = jax.random.split(key)
    x = jax.random.normal(kx, (B, D), dtype=jnp.float32)
    # Gaussian noise sampled outside the kernel (stand-in for torch.randn).
    # TODO(synk): optionally generate epsilon in-kernel via pltpu.prng_* to
    # drop one HBM stream (changes RNG source, not distribution).
    epsilon = jax.random.normal(keps, (B, D), dtype=jnp.float32)

    out = variational_dropout(x, epsilon, log_alpha, max_alpha=max_alpha)
    out = jax.block_until_ready(out)

    # Pure-JAX reference check of the same semantics.
    alpha_ref = jnp.exp(jnp.minimum(log_alpha, max_alpha))
    ref = x * (epsilon * alpha_ref[None, :] + 1.0)
    assert jnp.allclose(out, ref, atol=1e-6, rtol=1e-6), "mismatch vs reference"

    print("KERNEL_OK")
</pallas_src>

<mosaic_0001>
module attributes {stable_mosaic.version = 11 : i64} {
  func.func @_vd_kernel(%arg0: i32, %arg1: memref<2x128xf32, #tpu.memory_space<vmem>>, %arg2: memref<2x128xf32, #tpu.memory_space<vmem>>, %arg3: memref<1x128xf32, #tpu.memory_space<vmem>>, %arg4: memref<2x128xf32, #tpu.memory_space<vmem>>) attributes {dimension_semantics = [#tpu.dimension_semantics<parallel>], iteration_bounds = array<i64: 1>, scalar_prefetch = 0 : i64, scratch_operands = 0 : i64, tpu.core_type = #tpu.core_type<tc>, window_params = [{transform_indices = @transform_0, window_bounds = array<i64: 2, 128>}, {transform_indices = @transform_1, window_bounds = array<i64: 2, 128>}, {pipeline_mode = #tpu.pipeline_mode<synchronous>, transform_indices = @transform_2, window_bounds = array<i64: 1, 128>}, {transform_indices = @transform_3, window_bounds = array<i64: 2, 128>}]} {
    %c0 = arith.constant 0 : index
    %c0_0 = arith.constant 0 : index
    %0 = vector.load %arg1[%c0, %c0_0] : memref<2x128xf32, #tpu.memory_space<vmem>>, vector<2x128xf32>
    %c0_1 = arith.constant 0 : index
    %c0_2 = arith.constant 0 : index
    %1 = vector.load %arg2[%c0_1, %c0_2] : memref<2x128xf32, #tpu.memory_space<vmem>>, vector<2x128xf32>
    %c0_3 = arith.constant 0 : index
    %c0_4 = arith.constant 0 : index
    %2 = vector.load %arg3[%c0_3, %c0_4] : memref<1x128xf32, #tpu.memory_space<vmem>>, vector<1x128xf32>
    %3 = vector.broadcast %2 : vector<1x128xf32> to vector<2x128xf32>
    %4 = arith.mulf %1, %3 : vector<2x128xf32>
    %cst = arith.constant 1.000000e+00 : f32
    %5 = vector.broadcast %cst : f32 to vector<2x128xf32>
    %6 = arith.addf %4, %5 : vector<2x128xf32>
    %7 = arith.mulf %0, %6 : vector<2x128xf32>
    %c0_5 = arith.constant 0 : index
    %c0_6 = arith.constant 0 : index
    %8 = vector.load %arg4[%c0_5, %c0_6] : memref<2x128xf32, #tpu.memory_space<vmem>>, vector<2x128xf32>
    tpu.vector_store %arg4[%c0_5, %c0_6], %7 {strides = array<i32>} : memref<2x128xf32, #tpu.memory_space<vmem>>, vector<2x128xf32>,
    return
  }
  func.func @transform_0(%arg0: i32) -> (i32, i32) {
    %c0_i32 = arith.constant 0 : i32
    %c0_i32_0 = arith.constant 0 : i32
    return %arg0, %c0_i32 : i32, i32
  }
  func.func @transform_1(%arg0: i32) -> (i32, i32) {
    %c0_i32 = arith.constant 0 : i32
    %c0_i32_0 = arith.constant 0 : i32
    return %arg0, %c0_i32 : i32, i32
  }
  func.func @transform_2(%arg0: i32) -> (i32, i32) {
    %c0_i32 = arith.constant 0 : i32
    %c0_i32_0 = arith.constant 0 : i32
    %c0_i32_1 = arith.constant 0 : i32
    return %c0_i32, %c0_i32_0 : i32, i32
  }
  func.func @transform_3(%arg0: i32) -> (i32, i32) {
    %c0_i32 = arith.constant 0 : i32
    %c0_i32_0 = arith.constant 0 : i32
    return %arg0, %c0_i32 : i32, i32
  }
}

</mosaic_0001>

<llo_original>
// kernel: tpu_custom_call.1
$region0: #{tpu_custom_call.1}
  #allocation0 [shape = 'u32[]', space=smem, size = 0x4, offset = 0x4, fixed_abs, tag = 'smem constant byte address 0x4 - core index']
  #allocation1 [shape = 'u32[144,128]{1,0:T(1,128)}', space=vmem, size = 0x12000, scoped, tag = 'internal scratch']
  %s0 = inlined_call_operand.hbm [shape: f32[2,128], index: 0, kind: input, shape index: {}]
  %s1 = inlined_call_operand.hbm [shape: f32[2,128], index: 1, kind: input, shape index: {}]
  %s2 = inlined_call_operand.vmem [shape: f32[1,128], index: 2, kind: input, shape index: {}]
  %s3 = inlined_call_operand.hbm [shape: f32[2,128], index: 3, kind: output, shape index: {}]
  %s4 = sld [smem:[#allocation0]]
  $region30: #{tpu_custom_call.1} parent=0
    _
  %s6 = ssub.s32 1, %s4
  %s7 = scalar_select 0, %s6, %s4
  $region1: #{tpu_custom_call.1} parent=0
    #allocation2 [shape = 'u8[1024]{0}', space=vmem, size = 0x400, scoped, tag = 'input window, operand 0, single buffered']
    #allocation3 [shape = 's32[1]{0}', space=sflag, size = 0x4, scoped, tag = 'scoped memory for tpu_custom_call.1']
    #allocation4 [shape = 's32[1]{0}', space=sflag, size = 0x4, scoped, tag = 'scoped memory for tpu_custom_call.1']
    #allocation5 [shape = 'u8[1024]{0}', space=vmem, size = 0x400, scoped, tag = 'input window, operand 1, single buffered']
    #allocation6 [shape = 's32[1]{0}', space=sflag, size = 0x4, scoped, tag = 'scoped memory for tpu_custom_call.1']
    #allocation7 [shape = 'u8[1024]{0}', space=vmem, size = 0x400, scoped, tag = 'output window, operand 0, single buffered']
    %8 = vsyncpa [#allocation3], 0
    %9 = vsyncpa [#allocation6], 0
    %10 = vsyncpa [#allocation4], 0
    // Predicated region
    $region2: #{tpu_custom_call.1} parent=1 // pred_check
      _
    $region3: #{tpu_custom_call.1} parent=1 // pred_check_branch
      %12 = sbr.rel (0) target = $region5
    $region4: #{tpu_custom_call.1} parent=1 // pred_region
      %s14 = ssub.s32 32, 32
      %15 = vsyncadd [#allocation3], %s14
      %s17 = sshll.u32 [#allocation2], 4
      %s18 = int_to_ptr.vmem [resolvable:$true] %s17
      %20 = dma.hbm_to_vmem [thread:$0]  %s0, 32, %s18, [#allocation3]
    $region5: #{tpu_custom_call.1} parent=1 // pred_fallthru
      _
    // Predicated region
    $region6: #{tpu_custom_call.1} parent=1 // pred_check
      _
    $region7: #{tpu_custom_call.1} parent=1 // pred_check_branch
      %22 = sbr.rel (0) target = $region9
    $region8: #{tpu_custom_call.1} parent=1 // pred_region
      %s24 = ssub.s32 32, 32
      %25 = vsyncadd [#allocation6], %s24
      %s27 = sshll.u32 [#allocation5], 4
      %s28 = int_to_ptr.vmem [resolvable:$true] %s27
      %30 = dma.hbm_to_vmem [thread:$0]  %s1, 32, %s28, [#allocation6]
    $region9: #{tpu_custom_call.1} parent=1 // pred_fallthru
      _
    // Predicated region
    $region10: #{tpu_custom_call.1} parent=1 // pred_check
      _
    $region11: #{tpu_custom_call.1} parent=1 // pred_check_branch
      %32 = sbr.rel (0) target = $region13
    $region12: #{tpu_custom_call.1} parent=1 // pred_region
      _
    $region13: #{tpu_custom_call.1} parent=1 // pred_fallthru
      _
    // Predicated region
    $region14: #{tpu_custom_call.1} parent=1 // pred_check
      _
    $region15: #{tpu_custom_call.1} parent=1 // pred_check_branch
      %34 = sbr.rel (0) target = $region17
    $region16: #{tpu_custom_call.1} parent=1 // pred_region
      %35 = dma.done [#allocation3], 32
    $region17: #{tpu_custom_call.1} parent=1 // pred_fallthru
      _
    // Predicated region
    $region18: #{tpu_custom_call.1} parent=1 // pred_check
      _
    $region19: #{tpu_custom_call.1} parent=1 // pred_check_branch
      %37 = sbr.rel (0) target = $region21
    $region20: #{tpu_custom_call.1} parent=1 // pred_region
      %38 = dma.done [#allocation6], 32
    $region21: #{tpu_custom_call.1} parent=1 // pred_fallthru
      _
    %v39 = vld [vmem:[#allocation2] sm:$0x3]
    %v40 = vld [vmem:[#allocation5] sm:$0x3]
    %v41 = vld [vmem:[%s2] sm:$0x1]
    %v43 = vlaneseq
    %v44 = vshrl.u32 %v43, 7
    %v45 = vsub.s32 0, %v44
    %v46 = vrot.slane %v41, %v45
    %v48 = vmul.f32 %v40, %v46
    %v49 = vadd.f32 %v48, 1.0
    %v50 = vmul.f32 %v39, %v49
    %51 = vst [vmem:[#allocation7] sm:$0x3] %v50
    // Predicated region
    $region22: #{tpu_custom_call.1} parent=1 // pred_check
      _
    $region23: #{tpu_custom_call.1} parent=1 // pred_check_branch
      %53 = sbr.rel (0) target = $region25
    $region24: #{tpu_custom_call.1} parent=1 // pred_region
      %s55 = ssub.s32 32, 32
      %56 = vsyncadd [#allocation4], %s55
      %s58 = sshll.u32 [#allocation7], 4
      %s59 = int_to_ptr.vmem [resolvable:$true] %s58
      %61 = dma.vmem_to_hbm [thread:$0]  %s59, 32, %s3, [#allocation4]
    $region25: #{tpu_custom_call.1} parent=1 // pred_fallthru
      _
    // Predicated region
    $region26: #{tpu_custom_call.1} parent=1 // pred_check
      _
    $region27: #{tpu_custom_call.1} parent=1 // pred_check_branch
      %63 = sbr.rel (0) target = $region29
    $region28: #{tpu_custom_call.1} parent=1 // pred_region
      %64 = dma.done [#allocation4], 32
    $region29: #{tpu_custom_call.1} parent=1 // pred_fallthru
      _
    %65 = vsyncpa [#allocation3], 1
    %66 = vsyncpa [#allocation6], 1
    %67 = vsyncpa [#allocation4], 1

</llo_original>
